<compile_context>
chip_gen: v7x
topology: tpu7x:2x2x1
jax: 0.10.0
libtpu: 0.0.40
codegen_flags: <defaults>
</compile_context>

<pallas_src>
import jax
import jax.numpy as jnp
from jax.experimental import pallas as pl
from jax.experimental.pallas import tpu as pltpu

_LANE = 128
_SUBLANE = 8
# Per-tile target. Live VMEM ~= 4 x tile (input + output, double-buffered)
# ~= 16 MiB, comfortably under the explicit limit below on every generation.
_TILE_TARGET_BYTES = 4 * 1024 * 1024
_VMEM_LIMIT_BYTES = 48 * 1024 * 1024  # > 32 MiB scoped default, < 64 MiB v7x physical


def normalize_kernel(x_ref, scale_ref, bias_ref, o_ref):
    # x_ref / o_ref: (R, T) tile. scale_ref / bias_ref: (R, 1) or (1, T),
    # broadcast by the VPU. Single fused multiply-add in f32.
    x = x_ref[...].astype(jnp.float32)
    o_ref[...] = (x * scale_ref[...] + bias_ref[...]).astype(o_ref.dtype)


def _round_up(v, m):
    return -(-v // m) * m


def _choose_tiles(rows, cols, itemsize, target_bytes=_TILE_TARGET_BYTES):
    """Jointly pick (R, T). Prefer contiguous full-width rows (T == cols) and
    shrink R to fit a ~4x-live-buffer VMEM budget; only carve lane-aligned
    column tiles when even a minimal row tile at full width overflows."""
    budget = max(target_bytes // (4 * itemsize), _SUBLANE * _LANE)  # elems/tile

    full_rows_only = rows <= _SUBLANE          # can't tile below one sublane group
    r_min = rows if full_rows_only else _SUBLANE

    if r_min * cols <= budget:
        # Path 1: full-width rows -> one contiguous HBM burst per block.
        if full_rows_only:
            R = rows
        else:
            R = min(_round_up(rows, _SUBLANE),
                    max(_SUBLANE, (budget // cols) // _SUBLANE * _SUBLANE))
        T = cols
    else:
        # Path 2: column tiling -> minimal legal row tile, widest 128-aligned chunk.
        R = r_min
        if cols <= _LANE:
            T = cols
        else:
            T = min(_round_up(cols, _LANE),
                    max(_LANE, (budget // R) // _LANE * _LANE))

    # v7x megacore: don't collapse the leading parallel axis to a single block
    # when rows can legally be split in two.
    if not full_rows_only and -(-rows // R) == 1:
        half = _round_up(-(-rows // 2), _SUBLANE)
        if half < R and -(-rows // half) >= 2:
            R = half
    return R, T


def normalize(x, mean, std, *, target_bytes=_TILE_TARGET_BYTES):
    """Per-channel (x - mean[c]) / std[c] on an NCHW tensor (PyTorch Normalize)."""
    N, C, H, W = x.shape
    hw = H * W

    # Promote non-float (e.g. integer image) inputs to a float output.
    if not jnp.issubdtype(jnp.dtype(x.dtype), jnp.floating):
        x = x.astype(jnp.float32)
    out_dtype = x.dtype

    # Precompute the per-channel affine in f32: y = x * scale + bias.
    mean32 = jnp.asarray(mean, dtype=jnp.float32).reshape(C)
    std32 = jnp.asarray(std, dtype=jnp.float32).reshape(C)
    scale = 1.0 / std32
    bias = -mean32 / std32

    if hw % _LANE == 0:
        # Layout A: rows = N*C, cols = H*W (already lane-dense); per-row affine.
        rows, cols = N * C, hw
        x2 = x.reshape(rows, cols)
        scale_v = jnp.tile(scale, N).reshape(rows, 1)
        bias_v = jnp.tile(bias, N).reshape(rows, 1)
        row_affine = True
    else:
        # Layout B: rows = N, cols = C*H*W so stores stay as lane-dense as
        # possible for small / non-128-multiple spatial sizes; channel-repeated
        # lane vectors broadcast along sublanes.
        rows, cols = N, C * hw
        x2 = x.reshape(rows, cols)
        scale_v = jnp.repeat(scale, hw).reshape(1, cols)
        bias_v = jnp.repeat(bias, hw).reshape(1, cols)
        row_affine = False

    R, T = _choose_tiles(rows, cols, jnp.dtype(out_dtype).itemsize, target_bytes)
    grid = (pl.cdiv(rows, R), pl.cdiv(cols, T))  # column axis innermost: affine
    #                                              blocks stay resident across j.

    if row_affine:
        affine_spec = pl.BlockSpec((R, 1), lambda i, j: (i, 0))
    else:
        affine_spec = pl.BlockSpec((1, T), lambda i, j: (0, j))

    out2 = pl.pallas_call(
        normalize_kernel,
        out_shape=jax.ShapeDtypeStruct((rows, cols), out_dtype),
        grid=grid,
        in_specs=[
            pl.BlockSpec((R, T), lambda i, j: (i, j)),
            affine_spec,
            affine_spec,
        ],
        out_specs=pl.BlockSpec((R, T), lambda i, j: (i, j)),
        compiler_params=pltpu.CompilerParams(
            dimension_semantics=("parallel", "parallel"),
            vmem_limit_bytes=_VMEM_LIMIT_BYTES,
        ),
    )(x2, scale_v, bias_v)

    return out2.reshape(N, C, H, W)


if __name__ == "__main__":
    key = jax.random.PRNGKey(0)
    N, C, H, W = 2, 4, 16, 16
    x = jax.random.normal(key, (N, C, H, W), dtype=jnp.float32)

    # Deterministic per-channel normalization parameters (module __init__ args).
    mean = jnp.array([0.485, 0.456, 0.406, 0.5], dtype=jnp.float32)
    std = jnp.array([0.229, 0.224, 0.225, 0.25], dtype=jnp.float32)

    out = normalize(x, mean, std)
    out = jax.block_until_ready(out)

    # Reference check (pure JAX, mirrors the PyTorch per-channel loop).
    ref = (x - mean[None, :, None, None]) / std[None, :, None, None]
    assert out.shape == x.shape and out.dtype == x.dtype
    assert jnp.allclose(out, ref, atol=1e-5, rtol=1e-5)

    # Extra robustness check: odd spatial size exercises the (N, C*H*W) layout
    # and cdiv/masked-tail path.
    x2 = jax.random.normal(jax.random.PRNGKey(1), (2, 4, 15, 15), dtype=jnp.float32)
    out2 = jax.block_until_ready(normalize(x2, mean, std))
    ref2 = (x2 - mean[None, :, None, None]) / std[None, :, None, None]
    assert jnp.allclose(out2, ref2, atol=1e-5, rtol=1e-5)

    print("KERNEL_OK")
</pallas_src>

<mosaic_0001>
module attributes {stable_mosaic.version = 11 : i64} {
  func.func @normalize_kernel(%arg0: i32, %arg1: i32, %arg2: memref<8x256xf32, #tpu.memory_space<vmem>>, %arg3: memref<8x1xf32, #tpu.memory_space<vmem>>, %arg4: memref<8x1xf32, #tpu.memory_space<vmem>>, %arg5: memref<8x256xf32, #tpu.memory_space<vmem>>) attributes {dimension_semantics = [#tpu.dimension_semantics<parallel>, #tpu.dimension_semantics<parallel>], iteration_bounds = array<i64: 1, 1>, scalar_prefetch = 0 : i64, scratch_operands = 0 : i64, tpu.core_type = #tpu.core_type<tc>, window_params = [{transform_indices = @transform_0, window_bounds = array<i64: 8, 256>}, {transform_indices = @transform_1, window_bounds = array<i64: 8, 1>}, {transform_indices = @transform_2, window_bounds = array<i64: 8, 1>}, {transform_indices = @transform_3, window_bounds = array<i64: 8, 256>}]} {
    %c0 = arith.constant 0 : index
    %c0_0 = arith.constant 0 : index
    %0 = vector.load %arg2[%c0, %c0_0] : memref<8x256xf32, #tpu.memory_space<vmem>>, vector<8x256xf32>
    %c0_1 = arith.constant 0 : index
    %c0_2 = arith.constant 0 : index
    %1 = vector.load %arg3[%c0_1, %c0_2] : memref<8x1xf32, #tpu.memory_space<vmem>>, vector<8x1xf32>
    %2 = vector.broadcast %1 : vector<8x1xf32> to vector<8x256xf32>
    %3 = arith.mulf %0, %2 : vector<8x256xf32>
    %c0_3 = arith.constant 0 : index
    %c0_4 = arith.constant 0 : index
    %4 = vector.load %arg4[%c0_3, %c0_4] : memref<8x1xf32, #tpu.memory_space<vmem>>, vector<8x1xf32>
    %5 = vector.broadcast %4 : vector<8x1xf32> to vector<8x256xf32>
    %6 = arith.addf %3, %5 : vector<8x256xf32>
    %c0_5 = arith.constant 0 : index
    %c0_6 = arith.constant 0 : index
    %7 = vector.load %arg5[%c0_5, %c0_6] : memref<8x256xf32, #tpu.memory_space<vmem>>, vector<8x256xf32>
    tpu.vector_store %arg5[%c0_5, %c0_6], %6 {strides = array<i32>} : memref<8x256xf32, #tpu.memory_space<vmem>>, vector<8x256xf32>,
    return
  }
  func.func @transform_0(%arg0: i32, %arg1: i32) -> (i32, i32) {
    %c0_i32 = arith.constant 0 : i32
    return %arg0, %arg1 : i32, i32
  }
  func.func @transform_1(%arg0: i32, %arg1: i32) -> (i32, i32) {
    %c0_i32 = arith.constant 0 : i32
    %c0_i32_0 = arith.constant 0 : i32
    return %arg0, %c0_i32 : i32, i32
  }
  func.func @transform_2(%arg0: i32, %arg1: i32) -> (i32, i32) {
    %c0_i32 = arith.constant 0 : i32
    %c0_i32_0 = arith.constant 0 : i32
    return %arg0, %c0_i32 : i32, i32
  }
  func.func @transform_3(%arg0: i32, %arg1: i32) -> (i32, i32) {
    %c0_i32 = arith.constant 0 : i32
    return %arg0, %arg1 : i32, i32
  }
}

</mosaic_0001>

<llo_original>
// kernel: tpu_custom_call.1
$region0: #{tpu_custom_call.1}
  #allocation0 [shape = 'u32[]', space=smem, size = 0x4, offset = 0x4, fixed_abs, tag = 'smem constant byte address 0x4 - core index']
  #allocation1 [shape = 'u32[144,128]{1,0:T(1,128)}', space=vmem, size = 0x12000, scoped, tag = 'internal scratch']
  %s0 = inlined_call_operand.vmem [shape: f32[8,256], index: 0, kind: input, shape index: {}]
  %s1 = inlined_call_operand.vmem [shape: f32[8,1], index: 1, kind: input, shape index: {}]
  %s2 = inlined_call_operand.vmem [shape: f32[8,1], index: 2, kind: input, shape index: {}]
  %s3 = inlined_call_operand.hbm [shape: f32[8,256], index: 3, kind: output, shape index: {}]
  %s4 = sld [smem:[#allocation0]]
  $region22: #{tpu_custom_call.1} parent=0
    _
  %s6 = ssub.s32 1, %s4
  %s7 = scalar_select 0, %s6, %s4
  $region1: #{tpu_custom_call.1} parent=0
    #allocation2 [shape = 'u8[8192]{0}', space=vmem, size = 0x2000, scoped, tag = 'output window, operand 0, single buffered']
    #allocation3 [shape = 's32[1]{0}', space=sflag, size = 0x4, scoped, tag = 'scoped memory for tpu_custom_call.1']
    %8 = vsyncpa [#allocation3], 0
    // Predicated region
    $region2: #{tpu_custom_call.1} parent=1 // pred_check
      _
    $region3: #{tpu_custom_call.1} parent=1 // pred_check_branch
      %10 = sbr.rel (0) target = $region5
    $region4: #{tpu_custom_call.1} parent=1 // pred_region
      _
    $region5: #{tpu_custom_call.1} parent=1 // pred_fallthru
      _
    // Predicated region
    $region6: #{tpu_custom_call.1} parent=1 // pred_check
      _
    $region7: #{tpu_custom_call.1} parent=1 // pred_check_branch
      %12 = sbr.rel (0) target = $region9
    $region8: #{tpu_custom_call.1} parent=1 // pred_region
      _
    $region9: #{tpu_custom_call.1} parent=1 // pred_fallthru
      _
    // Predicated region
    $region10: #{tpu_custom_call.1} parent=1 // pred_check
      _
    $region11: #{tpu_custom_call.1} parent=1 // pred_check_branch
      %14 = sbr.rel (0) target = $region13
    $region12: #{tpu_custom_call.1} parent=1 // pred_region
      _
    $region13: #{tpu_custom_call.1} parent=1 // pred_fallthru
      _
    %v15 = vld [vmem:[%s0] sm:$0xff]
    %v16 = vld [vmem:[%s0 + $0x8] sm:$0xff]
    %v17 = vld [vmem:[%s1] sm:$0xff]
    %19 = vset.pattern.permute.xlu0 0
    %20 = vperm.xlu0 %19, %v17
    %v21 = vpop.permute.xlu0 %20
    %v23 = vmul.f32 %v15, %v21
    %v24 = vmul.f32 %v16, %v21
    %v25 = vld [vmem:[%s2] sm:$0xff]
    %27 = vset.pattern.permute.xlu0 0
    %28 = vperm.xlu0 %27, %v25
    %v29 = vpop.permute.xlu0 %28
    %v31 = vadd.f32 %v23, %v29
    %v32 = vadd.f32 %v24, %v29
    %33 = vst [vmem:[#allocation2] sm:$0xff] %v31
    %34 = vst [vmem:[#allocation2 + $0x8] sm:$0xff] %v32
    // Predicated region
    $region14: #{tpu_custom_call.1} parent=1 // pred_check
      _
    $region15: #{tpu_custom_call.1} parent=1 // pred_check_branch
      %36 = sbr.rel (0) target = $region17
    $region16: #{tpu_custom_call.1} parent=1 // pred_region
      %s38 = ssub.s32 256, 256
      %39 = vsyncadd [#allocation3], %s38
      %s41 = sshll.u32 [#allocation2], 4
      %s42 = int_to_ptr.vmem [resolvable:$true] %s41
      %44 = dma.vmem_to_hbm [thread:$0]  %s42, 256, %s3, [#allocation3]
    $region17: #{tpu_custom_call.1} parent=1 // pred_fallthru
      _
    // Predicated region
    $region18: #{tpu_custom_call.1} parent=1 // pred_check
      _
    $region19: #{tpu_custom_call.1} parent=1 // pred_check_branch
      %46 = sbr.rel (0) target = $region21
    $region20: #{tpu_custom_call.1} parent=1 // pred_region
      %47 = dma.done [#allocation3], 256
    $region21: #{tpu_custom_call.1} parent=1 // pred_fallthru
      _
    %48 = vsyncpa [#allocation3], 1

</llo_original>
